<compile_context>
chip_gen: v5e
topology: v5e:2x2
jax: 0.10.0
libtpu: 0.0.40
codegen_flags: <defaults>
</compile_context>

<pallas_src>
import jax
import jax.numpy as jnp
from jax.experimental import pallas as pl
from jax.experimental.pallas import tpu as pltpu  # noqa: F401  (see TODOs below)


def _twin_q_kernel(sa_ref, w1_ref, b1_ref, w2_ref, b2_ref, w3_ref, b3_ref,
                   q1_ref, q2_ref):
    """Both 3-layer ReLU Q-nets in one invocation; params stacked on axis 0."""
    x = sa_ref[...]                                    # (B, S+A)  f32
    out_refs = (q1_ref, q2_ref)
    for i in range(2):                                 # static unroll over the two nets
        # bf16 weights -> f32 in vregs (DMA cost halved, f32 math preserved).
        w1 = w1_ref[i].astype(jnp.float32)             # (S+A, H1)
        h1 = jnp.dot(x, w1, preferred_element_type=jnp.float32) + b1_ref[i]
        h1 = jnp.maximum(h1, 0.0)

        w2 = w2_ref[i].astype(jnp.float32)             # (H1, H2)
        h2 = jnp.dot(h1, w2, preferred_element_type=jnp.float32) + b2_ref[i]
        h2 = jnp.maximum(h2, 0.0)

        # Output layer as a lane reduction: w3 is the real (1, H2) row, no padded
        # (H2, 128) tile of zeros is ever DMA'd from HBM.
        w3 = w3_ref[i].astype(jnp.float32)             # (1, H2)
        q = jnp.sum(h2 * w3, axis=-1, keepdims=True) + b3_ref[i]   # (B, 1)
        out_refs[i][...] = q


def twin_q_forward(sa, stacked_params):
    """Run both Q-networks in one fused, grid-less pallas_call."""
    w1, b1, w2, b2, w3, b3 = stacked_params
    B = sa.shape[0]
    # Everything (input, bf16 weights, activations) totals ~0.3 MB -> full arrays
    # go straight to VMEM; no grid / pipelining needed at this size.
    # TODO(synk): for RL-sized batches, add a "parallel" batch-tiling grid axis
    #   (TM ~512) and size it against v7x's 64 MiB VMEM (set vmem_limit_bytes).
    # TODO(synk): on v7x (2 TensorCores) a core-sharded variant (grid=(2,) over
    #   nets with pltpu.CORE_PARALLEL / pl.core_map) could put one Q-net per TC.
    return pl.pallas_call(
        _twin_q_kernel,
        out_shape=(jax.ShapeDtypeStruct((B, 1), jnp.float32),
                   jax.ShapeDtypeStruct((B, 1), jnp.float32)),
    )(sa, w1, b1, w2, b2, w3, b3)


@jax.jit
def twinned_state_action_function(states, actions, stacked_params):
    """Forward of TwinnedStateActionFunction: returns (value1, value2), each (B, 1)."""
    # Tiny wrapper-side pack so layer 1 is a single K=S+A contraction in-kernel.
    sa = jnp.concatenate([states, actions], axis=1)
    return twin_q_forward(sa, stacked_params)


def xavier_uniform(key, fan_in, fan_out, gain=1.0):
    # nn.init.xavier_uniform_ is symmetric in fan_in/fan_out; orientation-free.
    bound = gain * (6.0 / (fan_in + fan_out)) ** 0.5
    return jax.random.uniform(key, (fan_in, fan_out), jnp.float32, -bound, bound)


def make_qnet_params(key, state_dim, action_dim, hidden_units=(256, 256)):
    """f32 params for one StateActionFunction: (state+action)->256->256->1, ReLU."""
    h1, h2 = hidden_units
    k1, k2, k3 = jax.random.split(key, 3)
    w1 = xavier_uniform(k1, state_dim + action_dim, h1)     # (S+A, H1), stored (in, out)
    b1 = jnp.zeros((1, h1), jnp.float32)
    w2 = xavier_uniform(k2, h1, h2)                         # (H1, H2)
    b2 = jnp.zeros((1, h2), jnp.float32)
    w3 = xavier_uniform(k3, h2, 1).T                        # (1, H2): PyTorch (out, in) layout
    b3 = jnp.zeros((1, 1), jnp.float32)
    return (w1, b1, w2, b2, w3, b3)


def stack_twin_params(params1, params2):
    """Stack the two Q-nets' params on a leading axis of 2; weights cast to bf16."""
    w1, b1, w2, b2, w3, b3 = (
        jnp.stack([a, b], axis=0) for a, b in zip(params1, params2)
    )
    return (w1.astype(jnp.bfloat16), b1,
            w2.astype(jnp.bfloat16), b2,
            w3.astype(jnp.bfloat16), b3)


def _reference_qnet(states, actions, params):
    """Pure-JAX reference for one Q-net (f32 math)."""
    w1, b1, w2, b2, w3, b3 = params
    sa = jnp.concatenate([states, actions], axis=1)
    h1 = jnp.maximum(sa @ w1 + b1, 0.0)
    h2 = jnp.maximum(h1 @ w2 + b2, 0.0)
    return h2 @ w3.T + b3


if __name__ == "__main__":
    batch = 8
    state_dim = 16
    action_dim = 8
    hidden_units = (256, 256)   # module default [256, 256]

    root = jax.random.PRNGKey(0)
    k_states, k_actions, k_net1, k_net2 = jax.random.split(root, 4)

    states = jax.random.normal(k_states, (batch, state_dim), jnp.float32)
    actions = jax.random.normal(k_actions, (batch, action_dim), jnp.float32)

    params1 = make_qnet_params(k_net1, state_dim, action_dim, hidden_units)
    params2 = make_qnet_params(k_net2, state_dim, action_dim, hidden_units)
    stacked = stack_twin_params(params1, params2)   # weights -> bf16 here

    value1, value2 = twinned_state_action_function(states, actions, stacked)
    jax.block_until_ready((value1, value2))

    assert value1.shape == (batch, 1) and value2.shape == (batch, 1)
    assert value1.dtype == jnp.float32 and value2.dtype == jnp.float32

    # Reference mirrors the kernel numerics: bf16-quantized weights, f32 math.
    def _quantized(p):
        w1, b1, w2, b2, w3, b3 = p
        q = lambda w: w.astype(jnp.bfloat16).astype(jnp.float32)
        return (q(w1), b1, q(w2), b2, q(w3), b3)

    ref1 = _reference_qnet(states, actions, _quantized(params1))
    ref2 = _reference_qnet(states, actions, _quantized(params2))
    assert jnp.allclose(value1, ref1, rtol=2e-2, atol=2e-2), float(jnp.max(jnp.abs(value1 - ref1)))
    assert jnp.allclose(value2, ref2, rtol=2e-2, atol=2e-2), float(jnp.max(jnp.abs(value2 - ref2)))

    print("KERNEL_OK")
</pallas_src>

<mosaic_0001>
module attributes {stable_mosaic.version = 11 : i64} {
  func.func @_twin_q_kernel(%arg0: memref<8x24xf32, #tpu.memory_space<vmem>>, %arg1: memref<2x24x256xbf16, #tpu.memory_space<vmem>>, %arg2: memref<2x1x256xf32, #tpu.memory_space<vmem>>, %arg3: memref<2x256x256xbf16, #tpu.memory_space<vmem>>, %arg4: memref<2x1x256xf32, #tpu.memory_space<vmem>>, %arg5: memref<2x1x256xbf16, #tpu.memory_space<vmem>>, %arg6: memref<2x1x1xf32, #tpu.memory_space<vmem>>, %arg7: memref<8x1xf32, #tpu.memory_space<vmem>>, %arg8: memref<8x1xf32, #tpu.memory_space<vmem>>) attributes {dimension_semantics = [], scalar_prefetch = 0 : i64, scratch_operands = 0 : i64, tpu.core_type = #tpu.core_type<tc>} {
    %c0 = arith.constant 0 : index
    %c0_0 = arith.constant 0 : index
    %0 = vector.load %arg0[%c0, %c0_0] : memref<8x24xf32, #tpu.memory_space<vmem>>, vector<8x24xf32>
    %c0_1 = arith.constant 0 : index
    %c0_2 = arith.constant 0 : index
    %c0_3 = arith.constant 0 : index
    %1 = vector.load %arg1[%c0_1, %c0_2, %c0_3] : memref<2x24x256xbf16, #tpu.memory_space<vmem>>, vector<1x24x256xbf16>
    %2 = vector.shape_cast %1 : vector<1x24x256xbf16> to vector<24x256xbf16>
    %3 = arith.extf %2 : vector<24x256xbf16> to vector<24x256xf32>
    %cst = arith.constant dense<0.000000e+00> : vector<8x256xf32>
    %4 = tpu.matmul %0, %3, %cst {dimension_numbers = #tpu.dot_dimension_numbers<[1], [0], [0], [1], [0, 0, 1, 1], [], []>} : vector<8x24xf32>, vector<24x256xf32>, vector<8x256xf32> -> vector<8x256xf32>
    %c0_4 = arith.constant 0 : index
    %c0_5 = arith.constant 0 : index
    %c0_6 = arith.constant 0 : index
    %5 = vector.load %arg2[%c0_4, %c0_5, %c0_6] : memref<2x1x256xf32, #tpu.memory_space<vmem>>, vector<1x1x256xf32>
    %6 = vector.shape_cast %5 : vector<1x1x256xf32> to vector<1x256xf32>
    %7 = vector.broadcast %6 : vector<1x256xf32> to vector<8x256xf32>
    %8 = arith.addf %4, %7 : vector<8x256xf32>
    %cst_7 = arith.constant 0.000000e+00 : f32
    %9 = vector.broadcast %cst_7 : f32 to vector<8x256xf32>
    %10 = arith.maximumf %8, %9 : vector<8x256xf32>
    %c0_8 = arith.constant 0 : index
    %c0_9 = arith.constant 0 : index
    %c0_10 = arith.constant 0 : index
    %11 = vector.load %arg3[%c0_8, %c0_9, %c0_10] : memref<2x256x256xbf16, #tpu.memory_space<vmem>>, vector<1x256x256xbf16>
    %12 = vector.shape_cast %11 : vector<1x256x256xbf16> to vector<256x256xbf16>
    %13 = arith.extf %12 : vector<256x256xbf16> to vector<256x256xf32>
    %cst_11 = arith.constant dense<0.000000e+00> : vector<8x256xf32>
    %14 = tpu.matmul %10, %13, %cst_11 {dimension_numbers = #tpu.dot_dimension_numbers<[1], [0], [0], [1], [0, 0, 1, 1], [], []>} : vector<8x256xf32>, vector<256x256xf32>, vector<8x256xf32> -> vector<8x256xf32>
    %c0_12 = arith.constant 0 : index
    %c0_13 = arith.constant 0 : index
    %c0_14 = arith.constant 0 : index
    %15 = vector.load %arg4[%c0_12, %c0_13, %c0_14] : memref<2x1x256xf32, #tpu.memory_space<vmem>>, vector<1x1x256xf32>
    %16 = vector.shape_cast %15 : vector<1x1x256xf32> to vector<1x256xf32>
    %17 = vector.broadcast %16 : vector<1x256xf32> to vector<8x256xf32>
    %18 = arith.addf %14, %17 : vector<8x256xf32>
    %cst_15 = arith.constant 0.000000e+00 : f32
    %19 = vector.broadcast %cst_15 : f32 to vector<8x256xf32>
    %20 = arith.maximumf %18, %19 : vector<8x256xf32>
    %c0_16 = arith.constant 0 : index
    %c0_17 = arith.constant 0 : index
    %c0_18 = arith.constant 0 : index
    %21 = vector.load %arg5[%c0_16, %c0_17, %c0_18] : memref<2x1x256xbf16, #tpu.memory_space<vmem>>, vector<1x1x256xbf16>
    %22 = vector.shape_cast %21 : vector<1x1x256xbf16> to vector<1x256xbf16>
    %23 = arith.extf %22 : vector<1x256xbf16> to vector<1x256xf32>
    %24 = vector.broadcast %23 : vector<1x256xf32> to vector<8x256xf32>
    %25 = arith.mulf %20, %24 : vector<8x256xf32>
    %cst_19 = arith.constant dense<0.000000e+00> : vector<8xf32>
    %26 = vector.multi_reduction <add>, %25, %cst_19 [1] : vector<8x256xf32> to vector<8xf32>
    %27 = vector.shape_cast %26 : vector<8xf32> to vector<8x1xf32>
    %c0_20 = arith.constant 0 : index
    %c0_21 = arith.constant 0 : index
    %c0_22 = arith.constant 0 : index
    %28 = vector.load %arg6[%c0_20, %c0_21, %c0_22] : memref<2x1x1xf32, #tpu.memory_space<vmem>>, vector<1x1x1xf32>
    %29 = vector.shape_cast %28 : vector<1x1x1xf32> to vector<1x1xf32>
    %30 = vector.broadcast %29 : vector<1x1xf32> to vector<8x1xf32>
    %31 = arith.addf %27, %30 : vector<8x1xf32>
    %c0_23 = arith.constant 0 : index
    %c0_24 = arith.constant 0 : index
    %32 = vector.load %arg7[%c0_23, %c0_24] : memref<8x1xf32, #tpu.memory_space<vmem>>, vector<8x1xf32>
    tpu.vector_store %arg7[%c0_23, %c0_24], %31 {strides = array<i32>} : memref<8x1xf32, #tpu.memory_space<vmem>>, vector<8x1xf32>,
    %c1 = arith.constant 1 : index
    %c0_25 = arith.constant 0 : index
    %c0_26 = arith.constant 0 : index
    %33 = vector.load %arg1[%c1, %c0_25, %c0_26] : memref<2x24x256xbf16, #tpu.memory_space<vmem>>, vector<1x24x256xbf16>
    %34 = vector.shape_cast %33 : vector<1x24x256xbf16> to vector<24x256xbf16>
    %35 = arith.extf %34 : vector<24x256xbf16> to vector<24x256xf32>
    %cst_27 = arith.constant dense<0.000000e+00> : vector<8x256xf32>
    %36 = tpu.matmul %0, %35, %cst_27 {dimension_numbers = #tpu.dot_dimension_numbers<[1], [0], [0], [1], [0, 0, 1, 1], [], []>} : vector<8x24xf32>, vector<24x256xf32>, vector<8x256xf32> -> vector<8x256xf32>
    %c1_28 = arith.constant 1 : index
    %c0_29 = arith.constant 0 : index
    %c0_30 = arith.constant 0 : index
    %37 = vector.load %arg2[%c1_28, %c0_29, %c0_30] : memref<2x1x256xf32, #tpu.memory_space<vmem>>, vector<1x1x256xf32>
    %38 = vector.shape_cast %37 : vector<1x1x256xf32> to vector<1x256xf32>
    %39 = vector.broadcast %38 : vector<1x256xf32> to vector<8x256xf32>
    %40 = arith.addf %36, %39 : vector<8x256xf32>
    %cst_31 = arith.constant 0.000000e+00 : f32
    %41 = vector.broadcast %cst_31 : f32 to vector<8x256xf32>
    %42 = arith.maximumf %40, %41 : vector<8x256xf32>
    %c1_32 = arith.constant 1 : index
    %c0_33 = arith.constant 0 : index
    %c0_34 = arith.constant 0 : index
    %43 = vector.load %arg3[%c1_32, %c0_33, %c0_34] : memref<2x256x256xbf16, #tpu.memory_space<vmem>>, vector<1x256x256xbf16>
    %44 = vector.shape_cast %43 : vector<1x256x256xbf16> to vector<256x256xbf16>
    %45 = arith.extf %44 : vector<256x256xbf16> to vector<256x256xf32>
    %cst_35 = arith.constant dense<0.000000e+00> : vector<8x256xf32>
    %46 = tpu.matmul %42, %45, %cst_35 {dimension_numbers = #tpu.dot_dimension_numbers<[1], [0], [0], [1], [0, 0, 1, 1], [], []>} : vector<8x256xf32>, vector<256x256xf32>, vector<8x256xf32> -> vector<8x256xf32>
    %c1_36 = arith.constant 1 : index
    %c0_37 = arith.constant 0 : index
    %c0_38 = arith.constant 0 : index
    %47 = vector.load %arg4[%c1_36, %c0_37, %c0_38] : memref<2x1x256xf32, #tpu.memory_space<vmem>>, vector<1x1x256xf32>
    %48 = vector.shape_cast %47 : vector<1x1x256xf32> to vector<1x256xf32>
    %49 = vector.broadcast %48 : vector<1x256xf32> to vector<8x256xf32>
    %50 = arith.addf %46, %49 : vector<8x256xf32>
    %cst_39 = arith.constant 0.000000e+00 : f32
    %51 = vector.broadcast %cst_39 : f32 to vector<8x256xf32>
    %52 = arith.maximumf %50, %51 : vector<8x256xf32>
    %c1_40 = arith.constant 1 : index
    %c0_41 = arith.constant 0 : index
    %c0_42 = arith.constant 0 : index
    %53 = vector.load %arg5[%c1_40, %c0_41, %c0_42] : memref<2x1x256xbf16, #tpu.memory_space<vmem>>, vector<1x1x256xbf16>
    %54 = vector.shape_cast %53 : vector<1x1x256xbf16> to vector<1x256xbf16>
    %55 = arith.extf %54 : vector<1x256xbf16> to vector<1x256xf32>
    %56 = vector.broadcast %55 : vector<1x256xf32> to vector<8x256xf32>
    %57 = arith.mulf %52, %56 : vector<8x256xf32>
    %cst_43 = arith.constant dense<0.000000e+00> : vector<8xf32>
    %58 = vector.multi_reduction <add>, %57, %cst_43 [1] : vector<8x256xf32> to vector<8xf32>
    %59 = vector.shape_cast %58 : vector<8xf32> to vector<8x1xf32>
    %c1_44 = arith.constant 1 : index
    %c0_45 = arith.constant 0 : index
    %c0_46 = arith.constant 0 : index
    %60 = vector.load %arg6[%c1_44, %c0_45, %c0_46] : memref<2x1x1xf32, #tpu.memory_space<vmem>>, vector<1x1x1xf32>
    %61 = vector.shape_cast %60 : vector<1x1x1xf32> to vector<1x1xf32>
    %62 = vector.broadcast %61 : vector<1x1xf32> to vector<8x1xf32>
    %63 = arith.addf %59, %62 : vector<8x1xf32>
    %c0_47 = arith.constant 0 : index
    %c0_48 = arith.constant 0 : index
    %64 = vector.load %arg8[%c0_47, %c0_48] : memref<8x1xf32, #tpu.memory_space<vmem>>, vector<8x1xf32>
    tpu.vector_store %arg8[%c0_47, %c0_48], %63 {strides = array<i32>} : memref<8x1xf32, #tpu.memory_space<vmem>>, vector<8x1xf32>,
    return
  }
}

</mosaic_0001>

<llo_original>
// kernel: twinned_state_action_function.1
$region0: #{twinned_state_action_function.1}
  #allocation0 [shape = 'u32[]', space=smem, size = 0x4, offset = 0x4, fixed_abs, tag = 'smem constant byte address 0x4 - core index']
  #allocation1 [shape = 'u32[72,128]{1,0:T(1,128)}', space=vmem, size = 0x9000, scoped, tag = 'internal scratch']
  %s0 = inlined_call_operand.vmem [shape: f32[8,24], index: 0, kind: input, shape index: {}]
  %s1 = inlined_call_operand.hbm [shape: bf16[2,24,256], index: 1, kind: input, shape index: {}]
  %s2 = inlined_call_operand.vmem [shape: f32[2,1,256], index: 2, kind: input, shape index: {}]
  %s3 = inlined_call_operand.hbm [shape: bf16[2,256,256], index: 3, kind: input, shape index: {}]
  %s4 = inlined_call_operand.vmem [shape: f32[2,1,256], index: 4, kind: input, shape index: {}]
  %s5 = inlined_call_operand.vmem [shape: bf16[2,1,256], index: 5, kind: input, shape index: {}]
  %s6 = inlined_call_operand.vmem [shape: f32[2,1,1], index: 6, kind: input, shape index: {}]
  %s7 = inlined_call_operand.vmem [shape: f32[8,1], index: 7, kind: output, shape index: {0}]
  %s8 = inlined_call_operand.vmem [shape: f32[8,1], index: 8, kind: output, shape index: {1}]
  %9 = xla_tuple %s7, %s8
  %s10 = sld [smem:[#allocation0]]
  $region54: #{twinned_state_action_function.1} parent=0
    _
  %s12 = ssub.s32 1, %s10
  %s13 = scalar_select 0, %s12, %s10
  $region1: #{twinned_state_action_function.1} parent=0
    #allocation2 [shape = 'u8[24576]{0}', space=vmem, size = 0x6000, scoped, tag = 'input window, operand 1, single buffered']
    #allocation3 [shape = 's32[1]{0}', space=sflag, size = 0x4, scoped, tag = 'scoped memory for twinned_state_action_function.1']
    #allocation4 [shape = 'u8[262144]{0}', space=vmem, size = 0x40000, scoped, tag = 'input window, operand 3, single buffered']
    #allocation5 [shape = 's32[1]{0}', space=sflag, size = 0x4, scoped, tag = 'scoped memory for twinned_state_action_function.1']
    %14 = vsyncpa [#allocation3], 0
    %15 = vsyncpa [#allocation5], 0
    // Predicated region
    $region2: #{twinned_state_action_function.1} parent=1 // pred_check
      _
    $region3: #{twinned_state_action_function.1} parent=1 // pred_check_branch
      %17 = sbr.rel (0) target = $region5
    $region4: #{twinned_state_action_function.1} parent=1 // pred_region
      _
    $region5: #{twinned_state_action_function.1} parent=1 // pred_fallthru
      _
    // Predicated region
    $region6: #{twinned_state_action_function.1} parent=1 // pred_check
      _
    $region7: #{twinned_state_action_function.1} parent=1 // pred_check_branch
      %19 = sbr.rel (0) target = $region9
    $region8: #{twinned_state_action_function.1} parent=1 // pred_region
      %21 = vsyncadd [#allocation3], 0
      %s22 = sshll.u32 %s1, 4
      %s23 = int_to_ptr.hbm [resolvable:$true] %s22
      %s24 = sshll.u32 [#allocation2], 4
      %s25 = int_to_ptr.vmem [resolvable:$true] %s24
      %30 = dma.hbm_to_vmem [thread:$0]  %s23, 768, %s25, [#allocation3], 128, 128, 8
    $region9: #{twinned_state_action_function.1} parent=1 // pred_fallthru
      _
    // Predicated region
    $region10: #{twinned_state_action_function.1} parent=1 // pred_check
      _
    $region11: #{twinned_state_action_function.1} parent=1 // pred_check_branch
      %32 = sbr.rel (0) target = $region13
    $region12: #{twinned_state_action_function.1} parent=1 // pred_region
      _
    $region13: #{twinned_state_action_function.1} parent=1 // pred_fallthru
      _
    // Predicated region
    $region14: #{twinned_state_action_function.1} parent=1 // pred_check
      _
    $region15: #{twinned_state_action_function.1} parent=1 // pred_check_branch
      %34 = sbr.rel (0) target = $region17
    $region16: #{twinned_state_action_function.1} parent=1 // pred_region
      %36 = vsyncadd [#allocation5], 0
      %s37 = sshll.u32 %s3, 4
      %s38 = int_to_ptr.hbm [resolvable:$true] %s37
      %s39 = sshll.u32 [#allocation4], 4
      %s40 = int_to_ptr.vmem [resolvable:$true] %s39
      %45 = dma.hbm_to_vmem [thread:$0]  %s38, 8192, %s40, [#allocation5], 128, 128, 8
    $region17: #{twinned_state_action_function.1} parent=1 // pred_fallthru
      _
    // Predicated region
    $region18: #{twinned_state_action_function.1} parent=1 // pred_check
      _
    $region19: #{twinned_state_action_function.1} parent=1 // pred_check_branch
      %47 = sbr.rel (0) target = $region21
    $region20: #{twinned_state_action_function.1} parent=1 // pred_region
      _
    $region21: #{twinned_state_action_function.1} parent=1 // pred_fallthru
      _
    // Predicated region
    $region22: #{twinned_state_action_function.1} parent=1 // pred_check
      _
    $region23: #{twinned_state_action_function.1} parent=1 // pred_check_branch
      %49 = sbr.rel (0) target = $region25
    $region24: #{twinned_state_action_function.1} parent=1 // pred_region
      _
    $region25: #{twinned_state_action_function.1} parent=1 // pred_fallthru
      _
    // Predicated region
    $region26: #{twinned_state_action_function.1} parent=1 // pred_check
      _
    $region27: #{twinned_state_action_function.1} parent=1 // pred_check_branch
      %51 = sbr.rel (0) target = $region29
    $region28: #{twinned_state_action_function.1} parent=1 // pred_region
      _
    $region29: #{twinned_state_action_function.1} parent=1 // pred_fallthru
      _
    // Predicated region
    $region30: #{twinned_state_action_function.1} parent=1 // pred_check
      _
    $region31: #{twinned_state_action_function.1} parent=1 // pred_check_branch
      %53 = sbr.rel (0) target = $region33
    $region32: #{twinned_state_action_function.1} parent=1 // pred_region
      %55 = dma.done [#allocation3], 768
    $region33: #{twinned_state_action_function.1} parent=1 // pred_fallthru
      _
    // Predicated region
    $region34: #{twinned_state_action_function.1} parent=1 // pred_check
      _
    $region35: #{twinned_state_action_function.1} parent=1 // pred_check_branch
      %57 = sbr.rel (0) target = $region37
    $region36: #{twinned_state_action_function.1} parent=1 // pred_region
      %59 = dma.done [#allocation5], 8192
    $region37: #{twinned_state_action_function.1} parent=1 // pred_fallthru
      _
    %v60 = vld [vmem:[%s0] sm:$0xff]
    %v61 = vld [vmem:[#allocation2] sm:$0xff]
    %v62 = vld [vmem:[#allocation2 + $0x8] sm:$0xff]
    %v63 = vld [vmem:[#allocation2 + $0x10] sm:$0xff]
    %v64 = vunpack.c.l.bf16 %v61
    %v65 = vunpack.c.h.bf16 %v61
    %v66 = vunpack.c.l.bf16 %v62
    %v67 = vunpack.c.h.bf16 %v62
    %v68 = vunpack.c.l.bf16 %v63
    %v69 = vunpack.c.h.bf16 %v63
    %v70 = vld [vmem:[%s2] sm:$0x3]
    %v72 = vperm.slane %v70, 0
    %v73 = vperm.slane %v70, 1
    %vm76 = vcmask 195584
    %v78 = vsel %vm76, %v60, 0
    %80 = vmatpush.msra.mxu0 0.0
    %81 = vmatpush.msra.mxu0 0.0
    %82 = vmatpush.msra.mxu0 0.0
    %83 = vmatpush.msra.mxu0 0.0
    %84 = vmatpush.msra.mxu0 0.0
    %85 = vmatpush.msra.mxu0 0.0
    %86 = vmatpush.msra.mxu0 0.0
    %87 = vmatpush.msra.mxu0 0.0
    %88 = vmatpush.msra.mxu0 0.0
    %89 = vmatpush.msra.mxu0 0.0
    %90 = vmatpush.msra.mxu0 0.0
    %91 = vmatpush.msra.mxu0 0.0
    %92 = vmatpush.msra.mxu0 0.0
    %93 = vmatpush.msra.mxu0 %v68
    %94 = vmatpush.msra.mxu0 %v66
    %95 = vmatpush.msra.mxu0 %v64
    %96 = vmatmul.f32.gmra.mxu0 %v78
    %v97 = vpop.f32.mrf.mxu0
    %v98 = vadd.f32 %v72, %v97
    %99 = vdwg.mxu0
    %100 = vmatpush.msra.mxu0 0.0
    %101 = vmatpush.msra.mxu0 0.0
    %102 = vmatpush.msra.mxu0 0.0
    %103 = vmatpush.msra.mxu0 0.0
    %104 = vmatpush.msra.mxu0 0.0
    %105 = vmatpush.msra.mxu0 0.0
    %106 = vmatpush.msra.mxu0 0.0
    %107 = vmatpush.msra.mxu0 0.0
    %108 = vmatpush.msra.mxu0 0.0
    %109 = vmatpush.msra.mxu0 0.0
    %110 = vmatpush.msra.mxu0 0.0
    %111 = vmatpush.msra.mxu0 0.0
    %112 = vmatpush.msra.mxu0 0.0
    %113 = vmatpush.msra.mxu0 %v69
    %114 = vmatpush.msra.mxu0 %v67
    %115 = vmatpush.msra.mxu0 %v65
    %116 = vmatmul.f32.gmra.mxu0 %v78
    %v117 = vpop.f32.mrf.mxu0
    %v118 = vadd.f32 %v73, %v117
    %119 = vdwg.mxu0
    %v120 = vmax.f32 %v98, 0.0
    %v121 = vmax.f32 %v118, 0.0
    %v122 = vld [vmem:[#allocation4] sm:$0xff]
    %v123 = vld [vmem:[#allocation4 + $0x8] sm:$0xff]
    %v124 = vld [vmem:[#allocation4 + $0x10] sm:$0xff]
    %v125 = vld [vmem:[#allocation4 + $0x18] sm:$0xff]
    %v126 = vld [vmem:[#allocation4 + $0x20] sm:$0xff]
    %v127 = vld [vmem:[#allocation4 + $0x28] sm:$0xff]
    %v128 = vld [vmem:[#allocation4 + $0x30] sm:$0xff]
    %v129 = vld [vmem:[#allocation4 + $0x38] sm:$0xff]
    %v130 = vld [vmem:[#allocation4 + $0x40] sm:$0xff]
    %v131 = vld [vmem:[#allocation4 + $0x48] sm:$0xff]
    %v132 = vld [vmem:[#allocation4 + $0x50] sm:$0xff]
    %v133 = vld [vmem:[#allocation4 + $0x58] sm:$0xff]
    %v134 = vld [vmem:[#allocation4 + $0x60] sm:$0xff]
    %v135 = vld [vmem:[#allocation4 + $0x68] sm:$0xff]
    %v136 = vld [vmem:[#allocation4 + $0x70] sm:$0xff]
    %v137 = vld [vmem:[#allocation4 + $0x78] sm:$0xff]
    %v138 = vld [vmem:[#allocation4 + $0x80] sm:$0xff]
    %v139 = vld [vmem:[#allocation4 + $0x88] sm:$0xff]
    %v140 = vld [vmem:[#allocation4 + $0x90] sm:$0xff]
    %v141 = vld [vmem:[#allocation4 + $0x98] sm:$0xff]
    %v142 = vld [vmem:[#allocation4 + $0xa0] sm:$0xff]
    %v143 = vld [vmem:[#allocation4 + $0xa8] sm:$0xff]
    %v144 = vld [vmem:[#allocation4 + $0xb0] sm:$0xff]
    %v145 = vld [vmem:[#allocation4 + $0xb8] sm:$0xff]
    %v146 = vld [vmem:[#allocation4 + $0xc0] sm:$0xff]
    %v147 = vld [vmem:[#allocation4 + $0xc8] sm:$0xff]
    %v148 = vld [vmem:[#allocation4 + $0xd0] sm:$0xff]
    %v149 = vld [vmem:[#allocation4 + $0xd8] sm:$0xff]
    %v150 = vld [vmem:[#allocation4 + $0xe0] sm:$0xff]
    %v151 = vld [vmem:[#allocation4 + $0xe8] sm:$0xff]
    %v152 = vld [vmem:[#allocation4 + $0xf0] sm:$0xff]
    %v153 = vld [vmem:[#allocation4 + $0xf8] sm:$0xff]
    %v154 = vunpack.c.l.bf16 %v122
    %v155 = vunpack.c.h.bf16 %v122
    %v156 = vunpack.c.l.bf16 %v123
    %v157 = vunpack.c.h.bf16 %v123
    %v158 = vunpack.c.l.bf16 %v124
    %v159 = vunpack.c.h.bf16 %v124
    %v160 = vunpack.c.l.bf16 %v125
    %v161 = vunpack.c.h.bf16 %v125
    %v162 = vunpack.c.l.bf16 %v126
    %v163 = vunpack.c.h.bf16 %v126
    %v164 = vunpack.c.l.bf16 %v127
    %v165 = vunpack.c.h.bf16 %v127
    %v166 = vunpack.c.l.bf16 %v128
    %v167 = vunpack.c.h.bf16 %v128
    %v168 = vunpack.c.l.bf16 %v129
    %v169 = vunpack.c.h.bf16 %v129
    %v170 = vunpack.c.l.bf16 %v130
    %v171 = vunpack.c.h.bf16 %v130
    %v172 = vunpack.c.l.bf16 %v131
    %v173 = vunpack.c.h.bf16 %v131
    %v174 = vunpack.c.l.bf16 %v132
    %v175 = vunpack.c.h.bf16 %v132
    %v176 = vunpack.c.l.bf16 %v133
    %v177 = vunpack.c.h.bf16 %v133
    %v178 = vunpack.c.l.bf16 %v134
    %v179 = vunpack.c.h.bf16 %v134
    %v180 = vunpack.c.l.bf16 %v135
    %v181 = vunpack.c.h.bf16 %v135
    %v182 = vunpack.c.l.bf16 %v136
    %v183 = vunpack.c.h.bf16 %v136
    %v184 = vunpack.c.l.bf16 %v137
    %v185 = vunpack.c.h.bf16 %v137
    %v186 = vunpack.c.l.bf16 %v138
    %v187 = vunpack.c.h.bf16 %v138
    %v188 = vunpack.c.l.bf16 %v139
    %v189 = vunpack.c.h.bf16 %v139
    %v190 = vunpack.c.l.bf16 %v140
    %v191 = vunpack.c.h.bf16 %v140
    %v192 = vunpack.c.l.bf16 %v141
    %v193 = vunpack.c.h.bf16 %v141
    %v194 = vunpack.c.l.bf16 %v142
    %v195 = vunpack.c.h.bf16 %v142
    %v196 = vunpack.c.l.bf16 %v143
    %v197 = vunpack.c.h.bf16 %v143
    %v198 = vunpack.c.l.bf16 %v144
    %v199 = vunpack.c.h.bf16 %v144
    %v200 = vunpack.c.l.bf16 %v145
    %v201 = vunpack.c.h.bf16 %v145
    %v202 = vunpack.c.l.bf16 %v146
    %v203 = vunpack.c.h.bf16 %v146
    %v204 = vunpack.c.l.bf16 %v147
    %v205 = vunpack.c.h.bf16 %v147
    %v206 = vunpack.c.l.bf16 %v148
    %v207 = vunpack.c.h.bf16 %v148
    %v208 = vunpack.c.l.bf16 %v149
    %v209 = vunpack.c.h.bf16 %v149
    %v210 = vunpack.c.l.bf16 %v150
    %v211 = vunpack.c.h.bf16 %v150
    %v212 = vunpack.c.l.bf16 %v151
    %v213 = vunpack.c.h.bf16 %v151
    %v214 = vunpack.c.l.bf16 %v152
    %v215 = vunpack.c.h.bf16 %v152
    %v216 = vunpack.c.l.bf16 %v153
    %v217 = vunpack.c.h.bf16 %v153
    %v218 = vld [vmem:[%s4] sm:$0x3]
    %v220 = vperm.slane %v218, 0
    %v221 = vperm.slane %v218, 1
    %224 = vmatpush.msra.mxu0 %v184
    %225 = vmatpush.msra.mxu0 %v182
    %226 = vmatpush.msra.mxu0 %v180
    %227 = vmatpush.msra.mxu0 %v178
    %228 = vmatpush.msra.mxu0 %v176
    %229 = vmatpush.msra.mxu0 %v174
    %230 = vmatpush.msra.mxu0 %v172
    %231 = vmatpush.msra.mxu0 %v170
    %232 = vmatpush.msra.mxu0 %v168
    %233 = vmatpush.msra.mxu0 %v166
    %234 = vmatpush.msra.mxu0 %v164
    %235 = vmatpush.msra.mxu0 %v162
    %236 = vmatpush.msra.mxu0 %v160
    %237 = vmatpush.msra.mxu0 %v158
    %238 = vmatpush.msra.mxu0 %v156
    %239 = vmatpush.msra.mxu0 %v154
    %240 = vmatmul.f32.gmra.mxu0 %v120
    %v241 = vpop.f32.mrf.mxu0
    %v242 = vadd.f32 %v220, %v241
    %243 = vdwg.mxu0
    %244 = vmatpush.msra.mxu0 %v216
    %245 = vmatpush.msra.mxu0 %v214
    %246 = vmatpush.msra.mxu0 %v212
    %247 = vmatpush.msra.mxu0 %v210
    %248 = vmatpush.msra.mxu0 %v208
    %249 = vmatpush.msra.mxu0 %v206
    %250 = vmatpush.msra.mxu0 %v204
    %251 = vmatpush.msra.mxu0 %v202
    %252 = vmatpush.msra.mxu0 %v200
    %253 = vmatpush.msra.mxu0 %v198
    %254 = vmatpush.msra.mxu0 %v196
    %255 = vmatpush.msra.mxu0 %v194
    %256 = vmatpush.msra.mxu0 %v192
    %257 = vmatpush.msra.mxu0 %v190
    %258 = vmatpush.msra.mxu0 %v188
    %259 = vmatpush.msra.mxu0 %v186
    %260 = vmatmul.f32.gmra.mxu0 %v121
    %v261 = vpop.f32.mrf.mxu0
    %v262 = vadd.f32 %v242, %v261
    %263 = vdwg.mxu0
    %264 = vmatpush.msra.mxu0 %v185
    %265 = vmatpush.msra.mxu0 %v183
    %266 = vmatpush.msra.mxu0 %v181
    %267 = vmatpush.msra.mxu0 %v179
    %268 = vmatpush.msra.mxu0 %v177
    %269 = vmatpush.msra.mxu0 %v175
    %270 = vmatpush.msra.mxu0 %v173
    %271 = vmatpush.msra.mxu0 %v171
    %272 = vmatpush.msra.mxu0 %v169
    %273 = vmatpush.msra.mxu0 %v167
    %274 = vmatpush.msra.mxu0 %v165
    %275 = vmatpush.msra.mxu0 %v163
    %276 = vmatpush.msra.mxu0 %v161
    %277 = vmatpush.msra.mxu0 %v159
    %278 = vmatpush.msra.mxu0 %v157
    %279 = vmatpush.msra.mxu0 %v155
    %280 = vmatmul.f32.gmra.mxu0 %v120
    %v281 = vpop.f32.mrf.mxu0
    %v282 = vadd.f32 %v221, %v281
    %283 = vdwg.mxu0
    %284 = vmatpush.msra.mxu0 %v217
    %285 = vmatpush.msra.mxu0 %v215
    %286 = vmatpush.msra.mxu0 %v213
    %287 = vmatpush.msra.mxu0 %v211
    %288 = vmatpush.msra.mxu0 %v209
    %289 = vmatpush.msra.mxu0 %v207
    %290 = vmatpush.msra.mxu0 %v205
    %291 = vmatpush.msra.mxu0 %v203
    %292 = vmatpush.msra.mxu0 %v201
    %293 = vmatpush.msra.mxu0 %v199
    %294 = vmatpush.msra.mxu0 %v197
    %295 = vmatpush.msra.mxu0 %v195
    %296 = vmatpush.msra.mxu0 %v193
    %297 = vmatpush.msra.mxu0 %v191
    %298 = vmatpush.msra.mxu0 %v189
    %299 = vmatpush.msra.mxu0 %v187
    %300 = vmatmul.f32.gmra.mxu0 %v121
    %v301 = vpop.f32.mrf.mxu0
    %v302 = vadd.f32 %v282, %v301
    %303 = vdwg.mxu0
    %v304 = vmax.f32 %v262, 0.0
    %v305 = vmax.f32 %v302, 0.0
    %v306 = vld [vmem:[%s5] sm:$0x3]
    %v307 = vunpack.c.l.bf16 %v306
    %v309 = vperm.slane %v307, 0
    %v310 = vperm.slane %v307, 2
    %v313 = vperm.slane %v309, 0
    %v314 = vperm.slane %v310, 0
    %v315 = vmul.f32 %v304, %v313
    %v316 = vmul.f32 %v305, %v314
    %v317 = vadd.f32 %v315, %v316
    %318 = vadd.xlane.f32.xlu0 %v317
    %v319 = vpop.xlane.xlu0 %318
    %v320 = vld [vmem:[%s6] sm:$0x1]
    %v322 = vperm.slane %v320, 0
    %v324 = vadd.f32 %v319, %v322
    %vm325 = vcmask 7168
    %326 = vst.msk [vmem:[%s7] sm:$0xff] %vm325, %v324
    %s327 = scalar_lea.vmem [#allocation2], 24
    %v328 = vld [vmem:[%s327] sm:$0xff]
    %v329 = vld [vmem:[%s327 + $0x8] sm:$0xff]
    %v330 = vld [vmem:[%s327 + $0x10] sm:$0xff]
    %v331 = vunpack.c.l.bf16 %v328
    %v332 = vunpack.c.h.bf16 %v328
    %v333 = vunpack.c.l.bf16 %v329
    %v334 = vunpack.c.h.bf16 %v329
    %v335 = vunpack.c.l.bf16 %v330
    %v336 = vunpack.c.h.bf16 %v330
    %s337 = scalar_lea.vmem %s2, 2
    %v338 = vld [vmem:[%s337] sm:$0x3]
    %v340 = vperm.slane %v338, 0
    %v341 = vperm.slane %v338, 1
    %344 = vmatpush.msra.mxu0 0.0
    %345 = vmatpush.msra.mxu0 0.0
    %346 = vmatpush.msra.mxu0 0.0
    %347 = vmatpush.msra.mxu0 0.0
    %348 = vmatpush.msra.mxu0 0.0
    %349 = vmatpush.msra.mxu0 0.0
    %350 = vmatpush.msra.mxu0 0.0
    %351 = vmatpush.msra.mxu0 0.0
    %352 = vmatpush.msra.mxu0 0.0
    %353 = vmatpush.msra.mxu0 0.0
    %354 = vmatpush.msra.mxu0 0.0
    %355 = vmatpush.msra.mxu0 0.0
    %356 = vmatpush.msra.mxu0 0.0
    %357 = vmatpush.msra.mxu0 %v335
    %358 = vmatpush.msra.mxu0 %v333
    %359 = vmatpush.msra.mxu0 %v331
    %360 = vmatmul.f32.gmra.mxu0 %v78
    %v361 = vpop.f32.mrf.mxu0
    %v362 = vadd.f32 %v340, %v361
    %363 = vdwg.mxu0
    %364 = vmatpush.msra.mxu0 0.0
    %365 = vmatpush.msra.mxu0 0.0
    %366 = vmatpush.msra.mxu0 0.0
    %367 = vmatpush.msra.mxu0 0.0
    %368 = vmatpush.msra.mxu0 0.0
    %369 = vmatpush.msra.mxu0 0.0
    %370 = vmatpush.msra.mxu0 0.0
    %371 = vmatpush.msra.mxu0 0.0
    %372 = vmatpush.msra.mxu0 0.0
    %373 = vmatpush.msra.mxu0 0.0
    %374 = vmatpush.msra.mxu0 0.0
    %375 = vmatpush.msra.mxu0 0.0
    %376 = vmatpush.msra.mxu0 0.0
    %377 = vmatpush.msra.mxu0 %v336
    %378 = vmatpush.msra.mxu0 %v334
    %379 = vmatpush.msra.mxu0 %v332
    %380 = vmatmul.f32.gmra.mxu0 %v78
    %v381 = vpop.f32.mrf.mxu0
    %v382 = vadd.f32 %v341, %v381
    %383 = vdwg.mxu0
    %v384 = vmax.f32 %v362, 0.0
    %v385 = vmax.f32 %v382, 0.0
    %s386 = scalar_lea.vmem [#allocation4], 256
    %v387 = vld [vmem:[%s386] sm:$0xff]
    %v388 = vld [vmem:[%s386 + $0x8] sm:$0xff]
    %v389 = vld [vmem:[%s386 + $0x10] sm:$0xff]
    %v390 = vld [vmem:[%s386 + $0x18] sm:$0xff]
    %v391 = vld [vmem:[%s386 + $0x20] sm:$0xff]
    %v392 = vld [vmem:[%s386 + $0x28] sm:$0xff]
    %v393 = vld [vmem:[%s386 + $0x30] sm:$0xff]
    %v394 = vld [vmem:[%s386 + $0x38] sm:$0xff]
    %v395 = vld [vmem:[%s386 + $0x40] sm:$0xff]
    %v396 = vld [vmem:[%s386 + $0x48] sm:$0xff]
    %v397 = vld [vmem:[%s386 + $0x50] sm:$0xff]
    %v398 = vld [vmem:[%s386 + $0x58] sm:$0xff]
    %v399 = vld [vmem:[%s386 + $0x60] sm:$0xff]
    %v400 = vld [vmem:[%s386 + $0x68] sm:$0xff]
    %v401 = vld [vmem:[%s386 + $0x70] sm:$0xff]
    %v402 = vld [vmem:[%s386 + $0x78] sm:$0xff]
    %v403 = vld [vmem:[%s386 + $0x80] sm:$0xff]
    %v404 = vld [vmem:[%s386 + $0x88] sm:$0xff]
    %v405 = vld [vmem:[%s386 + $0x90] sm:$0xff]
    %v406 = vld [vmem:[%s386 + $0x98] sm:$0xff]
    %v407 = vld [vmem:[%s386 + $0xa0] sm:$0xff]
    %v408 = vld [vmem:[%s386 + $0xa8] sm:$0xff]
    %v409 = vld [vmem:[%s386 + $0xb0] sm:$0xff]
    %v410 = vld [vmem:[%s386 + $0xb8] sm:$0xff]
    %v411 = vld [vmem:[%s386 + $0xc0] sm:$0xff]
    %v412 = vld [vmem:[%s386 + $0xc8] sm:$0xff]
    %v413 = vld [vmem:[%s386 + $0xd0] sm:$0xff]
    %v414 = vld [vmem:[%s386 + $0xd8] sm:$0xff]
    %v415 = vld [vmem:[%s386 + $0xe0] sm:$0xff]
    %v416 = vld [vmem:[%s386 + $0xe8] sm:$0xff]
    %v417 = vld [vmem:[%s386 + $0xf0] sm:$0xff]
    %v418 = vld [vmem:[%s386 + $0xf8] sm:$0xff]
    %v419 = vunpack.c.l.bf16 %v387
    %v420 = vunpack.c.h.bf16 %v387
    %v421 = vunpack.c.l.bf16 %v388
    %v422 = vunpack.c.h.bf16 %v388
    %v423 = vunpack.c.l.bf16 %v389
    %v424 = vunpack.c.h.bf16 %v389
    %v425 = vunpack.c.l.bf16 %v390
    %v426 = vunpack.c.h.bf16 %v390
    %v427 = vunpack.c.l.bf16 %v391
    %v428 = vunpack.c.h.bf16 %v391
    %v429 = vunpack.c.l.bf16 %v392
    %v430 = vunpack.c.h.bf16 %v392
    %v431 = vunpack.c.l.bf16 %v393
    %v432 = vunpack.c.h.bf16 %v393
    %v433 = vunpack.c.l.bf16 %v394
    %v434 = vunpack.c.h.bf16 %v394
    %v435 = vunpack.c.l.bf16 %v395
    %v436 = vunpack.c.h.bf16 %v395
    %v437 = vunpack.c.l.bf16 %v396
    %v438 = vunpack.c.h.bf16 %v396
    %v439 = vunpack.c.l.bf16 %v397
    %v440 = vunpack.c.h.bf16 %v397
    %v441 = vunpack.c.l.bf16 %v398
    %v442 = vunpack.c.h.bf16 %v398
    %v443 = vunpack.c.l.bf16 %v399
    %v444 = vunpack.c.h.bf16 %v399
    %v445 = vunpack.c.l.bf16 %v400
    %v446 = vunpack.c.h.bf16 %v400
    %v447 = vunpack.c.l.bf16 %v401
    %v448 = vunpack.c.h.bf16 %v401
    %v449 = vunpack.c.l.bf16 %v402
    %v450 = vunpack.c.h.bf16 %v402
    %v451 = vunpack.c.l.bf16 %v403
    %v452 = vunpack.c.h.bf16 %v403
    %v453 = vunpack.c.l.bf16 %v404
    %v454 = vunpack.c.h.bf16 %v404
    %v455 = vunpack.c.l.bf16 %v405
    %v456 = vunpack.c.h.bf16 %v405
    %v457 = vunpack.c.l.bf16 %v406
    %v458 = vunpack.c.h.bf16 %v406
    %v459 = vunpack.c.l.bf16 %v407
    %v460 = vunpack.c.h.bf16 %v407
    %v461 = vunpack.c.l.bf16 %v408
    %v462 = vunpack.c.h.bf16 %v408
    %v463 = vunpack.c.l.bf16 %v409
    %v464 = vunpack.c.h.bf16 %v409
    %v465 = vunpack.c.l.bf16 %v410
    %v466 = vunpack.c.h.bf16 %v410
    %v467 = vunpack.c.l.bf16 %v411
    %v468 = vunpack.c.h.bf16 %v411
    %v469 = vunpack.c.l.bf16 %v412
    %v470 = vunpack.c.h.bf16 %v412
    %v471 = vunpack.c.l.bf16 %v413
    %v472 = vunpack.c.h.bf16 %v413
    %v473 = vunpack.c.l.bf16 %v414
    %v474 = vunpack.c.h.bf16 %v414
    %v475 = vunpack.c.l.bf16 %v415
    %v476 = vunpack.c.h.bf16 %v415
    %v477 = vunpack.c.l.bf16 %v416
    %v478 = vunpack.c.h.bf16 %v416
    %v479 = vunpack.c.l.bf16 %v417
    %v480 = vunpack.c.h.bf16 %v417
    %v481 = vunpack.c.l.bf16 %v418
    %v482 = vunpack.c.h.bf16 %v418
    %s483 = scalar_lea.vmem %s4, 2
    %v484 = vld [vmem:[%s483] sm:$0x3]
    %v486 = vperm.slane %v484, 0
    %v487 = vperm.slane %v484, 1
    %490 = vmatpush.msra.mxu0 %v449
    %491 = vmatpush.msra.mxu0 %v447
    %492 = vmatpush.msra.mxu0 %v445
    %493 = vmatpush.msra.mxu0 %v443
    %494 = vmatpush.msra.mxu0 %v441
    %495 = vmatpush.msra.mxu0 %v439
    %496 = vmatpush.msra.mxu0 %v437
    %497 = vmatpush.msra.mxu0 %v435
    %498 = vmatpush.msra.mxu0 %v433
    %499 = vmatpush.msra.mxu0 %v431
    %500 = vmatpush.msra.mxu0 %v429
    %501 = vmatpush.msra.mxu0 %v427
    %502 = vmatpush.msra.mxu0 %v425
    %503 = vmatpush.msra.mxu0 %v423
    %504 = vmatpush.msra.mxu0 %v421
    %505 = vmatpush.msra.mxu0 %v419
    %506 = vmatmul.f32.gmra.mxu0 %v384
    %v507 = vpop.f32.mrf.mxu0
    %v508 = vadd.f32 %v486, %v507
    %509 = vdwg.mxu0
    %510 = vmatpush.msra.mxu0 %v481
    %511 = vmatpush.msra.mxu0 %v479
    %512 = vmatpush.msra.mxu0 %v477
    %513 = vmatpush.msra.mxu0 %v475
    %514 = vmatpush.msra.mxu0 %v473
    %515 = vmatpush.msra.mxu0 %v471
    %516 = vmatpush.msra.mxu0 %v469
    %517 = vmatpush.msra.mxu0 %v467
    %518 = vmatpush.msra.mxu0 %v465
    %519 = vmatpush.msra.mxu0 %v463
    %520 = vmatpush.msra.mxu0 %v461
    %521 = vmatpush.msra.mxu0 %v459
    %522 = vmatpush.msra.mxu0 %v457
    %523 = vmatpush.msra.mxu0 %v455
    %524 = vmatpush.msra.mxu0 %v453
    %525 = vmatpush.msra.mxu0 %v451
    %526 = vmatmul.f32.gmra.mxu0 %v385
    %v527 = vpop.f32.mrf.mxu0
    %v528 = vadd.f32 %v508, %v527
    %529 = vdwg.mxu0
    %530 = vmatpush.msra.mxu0 %v450
    %531 = vmatpush.msra.mxu0 %v448
    %532 = vmatpush.msra.mxu0 %v446
    %533 = vmatpush.msra.mxu0 %v444
    %534 = vmatpush.msra.mxu0 %v442
    %535 = vmatpush.msra.mxu0 %v440
    %536 = vmatpush.msra.mxu0 %v438
    %537 = vmatpush.msra.mxu0 %v436
    %538 = vmatpush.msra.mxu0 %v434
    %539 = vmatpush.msra.mxu0 %v432
    %540 = vmatpush.msra.mxu0 %v430
    %541 = vmatpush.msra.mxu0 %v428
    %542 = vmatpush.msra.mxu0 %v426
    %543 = vmatpush.msra.mxu0 %v424
    %544 = vmatpush.msra.mxu0 %v422
    %545 = vmatpush.msra.mxu0 %v420
    %546 = vmatmul.f32.gmra.mxu0 %v384
    %v547 = vpop.f32.mrf.mxu0
    %v548 = vadd.f32 %v487, %v547
    %549 = vdwg.mxu0
    %550 = vmatpush.msra.mxu0 %v482
    %551 = vmatpush.msra.mxu0 %v480
    %552 = vmatpush.msra.mxu0 %v478
    %553 = vmatpush.msra.mxu0 %v476
    %554 = vmatpush.msra.mxu0 %v474
    %555 = vmatpush.msra.mxu0 %v472
    %556 = vmatpush.msra.mxu0 %v470
    %557 = vmatpush.msra.mxu0 %v468
    %558 = vmatpush.msra.mxu0 %v466
    %559 = vmatpush.msra.mxu0 %v464
    %560 = vmatpush.msra.mxu0 %v462
    %561 = vmatpush.msra.mxu0 %v460
    %562 = vmatpush.msra.mxu0 %v458
    %563 = vmatpush.msra.mxu0 %v456
    %564 = vmatpush.msra.mxu0 %v454
    %565 = vmatpush.msra.mxu0 %v452
    %566 = vmatmul.f32.gmra.mxu0 %v385
    %v567 = vpop.f32.mrf.mxu0
    %v568 = vadd.f32 %v548, %v567
    %569 = vdwg.mxu0
    %v570 = vmax.f32 %v528, 0.0
    %v571 = vmax.f32 %v568, 0.0
    %s572 = scalar_lea.vmem %s5, 2
    %v573 = vld [vmem:[%s572] sm:$0x3]
    %v574 = vunpack.c.l.bf16 %v573
    %v576 = vperm.slane %v574, 0
    %v577 = vperm.slane %v574, 2
    %v580 = vperm.slane %v576, 0
    %v581 = vperm.slane %v577, 0
    %v582 = vmul.f32 %v570, %v580
    %v583 = vmul.f32 %v571, %v581
    %v584 = vadd.f32 %v582, %v583
    %585 = vadd.xlane.f32.xlu0 %v584
    %v586 = vpop.xlane.xlu0 %585
    %s587 = scalar_lea.vmem %s6, 1
    %v588 = vld [vmem:[%s587] sm:$0x1]
    %v590 = vperm.slane %v588, 0
    %v592 = vadd.f32 %v586, %v590
    %593 = vst.msk [vmem:[%s8] sm:$0xff] %vm325, %v592
    // Predicated region
    $region38: #{twinned_state_action_function.1} parent=1 // pred_check
      _
    $region39: #{twinned_state_action_function.1} parent=1 // pred_check_branch
      %595 = sbr.rel (0) target = $region41
    $region40: #{twinned_state_action_function.1} parent=1 // pred_region
      _
    $region41: #{twinned_state_action_function.1} parent=1 // pred_fallthru
      _
    // Predicated region
    $region42: #{twinned_state_action_function.1} parent=1 // pred_check
      _
    $region43: #{twinned_state_action_function.1} parent=1 // pred_check_branch
      %597 = sbr.rel (0) target = $region45
    $region44: #{twinned_state_action_function.1} parent=1 // pred_region
      _
    $region45: #{twinned_state_action_function.1} parent=1 // pred_fallthru
      _
    // Predicated region
    $region46: #{twinned_state_action_function.1} parent=1 // pred_check
      _
    $region47: #{twinned_state_action_function.1} parent=1 // pred_check_branch
      %599 = sbr.rel (0) target = $region49
    $region48: #{twinned_state_action_function.1} parent=1 // pred_region
      _
    $region49: #{twinned_state_action_function.1} parent=1 // pred_fallthru
      _
    // Predicated region
    $region50: #{twinned_state_action_function.1} parent=1 // pred_check
      _
    $region51: #{twinned_state_action_function.1} parent=1 // pred_check_branch
      %601 = sbr.rel (0) target = $region53
    $region52: #{twinned_state_action_function.1} parent=1 // pred_region
      _
    $region53: #{twinned_state_action_function.1} parent=1 // pred_fallthru
      _
    %602 = vsyncpa [#allocation3], 1
    %603 = vsyncpa [#allocation5], 1

</llo_original>
